<compile_context>
chip_gen: v7x
topology: tpu7x:2x2x1
jax: 0.10.0
libtpu: 0.0.40
codegen_flags: <defaults>
</compile_context>

<pallas_src>
import functools

import numpy as np
import jax
import jax.numpy as jnp
from jax.experimental import pallas as pl
from jax.experimental.pallas import tpu as pltpu


# ---------------------------------------------------------------------------
# helpers
# ---------------------------------------------------------------------------
def _round_up(n, m):
    return ((n + m - 1) // m) * m


def _pad2d(a, rows, cols):
    out = np.zeros((rows, cols), np.float32)
    out[: a.shape[0], : a.shape[1]] = a
    return out


def _conv_as_dense(w, b, h, wid):
    """k=3 / stride=2 / pad=0 conv as a dense (Cin*H*W, Cout*OH*OW) matrix.

    Both sides use NCHW flatten order (feature = c*H*W + y*W + x), so chaining
    dense layers reproduces torch's conv stack + flatten(start_dim=1) exactly.
    """
    cout, cin, kh, kw = w.shape
    oh = (h - kh) // 2 + 1
    ow = (wid - kw) // 2 + 1
    mat = np.zeros((cin * h * wid, cout * oh * ow), np.float32)
    for yo in range(oh):
        for xo in range(ow):
            cols = np.arange(cout) * (oh * ow) + yo * ow + xo
            for i in range(kh):
                for j in range(kw):
                    rows = np.arange(cin) * (h * wid) + (2 * yo + i) * wid + (2 * xo + j)
                    mat[np.ix_(rows, cols)] = w[:, :, i, j].T          # (Cin, Cout)
    bias = np.repeat(b, oh * ow)                                       # (Cout*OH*OW,)
    return mat, bias, oh, ow


# ---------------------------------------------------------------------------
# Pallas kernel: fused bf16 matmul chain + Mish + masked log_softmax
# ---------------------------------------------------------------------------
def _mish(x):
    # mish(x) = x * tanh(softplus(x));  tanh(softplus(x)) == (n - 1) / (n + 1)
    # with n = (1 + e^x)^2.  Single exp (EUP) + exact divide (kernel is
    # MXU/DMA-bound, so the exact path is free).
    # NOTE: for x <~ -17 in f32, (n - 1) cancels to 0 and mish returns 0 where
    # the true value is ~x*e^x (|.| ~ 1e-7); numerically harmless here.
    e = jnp.exp(jnp.minimum(x, 25.0))   # clamp only avoids overflow; result == x there
    n = (e + 1.0) * (e + 1.0)
    return x * (n - 1.0) / (n + 1.0)


def _fused_forward_kernel(*refs, n_layers, n_valid):
    """refs = [x, w_0 .. w_{L-1} (last = head, no bias), bias_pack, out]."""
    x_ref = refs[0]
    w_refs = refs[1:1 + n_layers]
    b_ref = refs[1 + n_layers]          # (n_layers-1, max_n_pad) f32
    o_ref = refs[-1]

    h = x_ref[...]                      # (tm, K0) bf16
    for l in range(n_layers - 1):       # hidden layers: matmul + bias + mish
        w_ref = w_refs[l]
        acc = jnp.dot(h, w_ref[...], preferred_element_type=jnp.float32)
        bias = b_ref[l:l + 1, :w_ref.shape[1]]          # (1, n_pad_l) f32, static slice
        h = _mish(acc + bias).astype(jnp.bfloat16)      # back to bf16 for the next MXU pass

    logits = jnp.dot(h, w_refs[-1][...], preferred_element_type=jnp.float32)  # head, no bias

    # log_softmax over the first n_valid lanes only (the rest are zero padding).
    col = jax.lax.broadcasted_iota(jnp.int32, logits.shape, 1)
    valid = col < n_valid
    masked = jnp.where(valid, logits, jnp.float32(-1e30))
    m = jnp.max(masked, axis=-1, keepdims=True)
    s = masked - m
    lse = jnp.log(jnp.sum(jnp.exp(s), axis=-1, keepdims=True))
    # padded lanes are written as 0.0 so the raw output never holds garbage
    o_ref[...] = jnp.where(valid, s - lse, 0.0)


# ---------------------------------------------------------------------------
# parameter init (PyTorch layouts) + one-time kernel-layout prep
# ---------------------------------------------------------------------------
def init_params(key, img_size, n_digits, conv_sizes, lin_sizes):
    """Deterministic init in PyTorch-native layouts (conv (Cout,Cin,3,3), lin (out,in))."""
    conv_out_hw = img_size
    for _ in range(len(conv_sizes)):
        conv_out_hw = int(0.5 * (conv_out_hw - 3) + 1)
    conv_chs = (1,) + tuple(conv_sizes)

    params = {"conv": [], "lin": [], "lin_out": None}
    keys = jax.random.split(key, 2 * len(conv_sizes) + 2 * len(lin_sizes) + 1)
    ki = 0
    for cin, cout in zip(conv_chs[:-1], conv_chs[1:]):
        w = jax.random.normal(keys[ki], (cout, cin, 3, 3), jnp.float32) / np.sqrt(cin * 9)
        ki += 1
        b = jax.random.normal(keys[ki], (cout,), jnp.float32) * 0.01
        ki += 1
        params["conv"].append((w, b))

    lin_dims = (conv_out_hw ** 2 * conv_chs[-1],) + tuple(lin_sizes)
    for din, dout in zip(lin_dims[:-1], lin_dims[1:]):
        w = jax.random.normal(keys[ki], (dout, din), jnp.float32) / np.sqrt(din)
        ki += 1
        b = jax.random.normal(keys[ki], (dout,), jnp.float32) * 0.01
        ki += 1
        params["lin"].append((w, b))

    w_out = jax.random.normal(keys[ki], (n_digits, lin_dims[-1]), jnp.float32) / np.sqrt(lin_dims[-1])
    params["lin_out"] = w_out
    return params


def prepare_params(params, img_size):
    """One-time, hoisted prep:
       * conv layers -> dense (Cin*H*W, Cout*OH*OW) matrices (NCHW flatten order),
       * linear weights transposed to (in, out),
       * every K / N zero-padded to a multiple of 128, weights cast to bf16,
       * all hidden-layer biases packed into ONE (n_hidden, max_n_pad) f32 array
         (single DMA descriptor instead of one per layer).
    Returns (weights_bf16_list, bias_pack_f32)."""
    mats = []
    h = w_sp = img_size
    for (w, b) in params["conv"]:
        m, bias, oh, ow = _conv_as_dense(np.asarray(w), np.asarray(b), h, w_sp)
        mats.append((m, bias))
        h, w_sp = oh, ow
    for (w, b) in params["lin"]:
        mats.append((np.asarray(w).T, np.asarray(b)))          # (in, out)
    mats.append((np.asarray(params["lin_out"]).T, None))       # head: no bias

    weights = []
    bias_rows = []                                             # (values, n_pad)
    k_real = mats[0][0].shape[0]
    k_pad = _round_up(k_real, 128)
    for w, b in mats:
        assert w.shape[0] == k_real, (w.shape, k_real)
        n_real = w.shape[1]
        n_pad = _round_up(n_real, 128)
        # bf16 weights: native MXU dtype (f32 x f32 is multi-pass emulation)
        # and half the resident / DMA'd bytes.
        weights.append(jnp.asarray(_pad2d(w, k_pad, n_pad), jnp.bfloat16))
        if b is not None:
            bias_rows.append((np.asarray(b, np.float32), n_pad))
        k_real, k_pad = n_real, n_pad

    max_n = max(n for _, n in bias_rows)
    bias_pack = np.zeros((len(bias_rows), max_n), np.float32)
    for i, (b, _) in enumerate(bias_rows):
        bias_pack[i, : b.shape[0]] = b
    return weights, jnp.asarray(bias_pack)


# ---------------------------------------------------------------------------
# forward wrapper: one pallas_call for the whole network
# ---------------------------------------------------------------------------
def multi_conv_lin_forward(prepped, x, n_digits):
    """x: (B, img, img) f32 -> (B, n_digits) f32 log-probabilities."""
    # dropout(x) is identity at inference.
    weights, bias_pack = prepped
    B = x.shape[0]
    k0 = weights[0].shape[0]
    n_out = weights[-1].shape[1]

    # --- balanced row (batch) tiling --------------------------------------
    # Pick the grid first (tiles capped at 256 rows: the MXU saturates there,
    # bigger tiles only raise VMEM/spill pressure), then a balanced
    # tm = cdiv(B, grid) rounded to 8 sublanes -> padding waste < 8 rows/tile.
    # Force >= 2 grid steps once B >= 16 so dimension_semantics=("parallel",)
    # actually feeds v7x's second TensorCore (no effect on single-TC v5e/v6e).
    TM_CAP = 256
    grid_n = max(1, pl.cdiv(B, TM_CAP))
    if B >= 16:
        grid_n = max(grid_n, 2)
    tm = _round_up(pl.cdiv(B, grid_n), 8)
    m_pad = tm * grid_n

    # bf16 activation stream: the kernel casts to bf16 before the first dot
    # anyway, so this halves HBM stream bytes at zero extra precision cost.
    xf = x.reshape(B, -1).astype(jnp.bfloat16)                 # NCHW flatten (C=1)
    if m_pad > B or k0 > xf.shape[1]:
        xf = jnp.pad(xf, ((0, m_pad - B), (0, k0 - xf.shape[1])))

    # Weights / bias pack: constant index_map (VMEM-resident across the grid);
    # Buffered(1) -> the resident set is not pointlessly double-buffered.
    def _resident_spec(shape):
        return pl.BlockSpec(shape, lambda i: (0, 0), pipeline_mode=pl.Buffered(1))

    in_specs = [pl.BlockSpec((tm, k0), lambda i: (i, 0))]
    in_specs += [_resident_spec(w.shape) for w in weights]
    in_specs += [_resident_spec(bias_pack.shape)]

    out = pl.pallas_call(
        functools.partial(_fused_forward_kernel,
                          n_layers=len(weights), n_valid=n_digits),
        out_shape=jax.ShapeDtypeStruct((m_pad, n_out), jnp.float32),
        grid=(grid_n,),
        in_specs=in_specs,
        out_specs=pl.BlockSpec((tm, n_out), lambda i: (i, 0)),
        # Working set (bf16 weights ~0.25 MiB + double-buffered tm x k0 bf16
        # x-tiles + tm x n_out f32 out-tiles) is far below even v5e's 16 MiB
        # default scoped VMEM.  If TM_CAP is ever raised past ~1024, set
        # vmem_limit_bytes here explicitly (v5e OOMs first, v7x has 64 MiB total).
        compiler_params=pltpu.CompilerParams(dimension_semantics=("parallel",)),
    )(xf, *weights, bias_pack)

    return out[:B, :n_digits]


# ---------------------------------------------------------------------------
# pure-JAX reference (independent path: lax.conv, f32) for correctness checking
# ---------------------------------------------------------------------------
def _reference_forward(params, x):
    def mish(v):
        return v * jnp.tanh(jax.nn.softplus(v))

    h = x[:, None, :, :]
    for (w, b) in params["conv"]:
        h = jax.lax.conv_general_dilated(h, w, window_strides=(2, 2), padding="VALID",
                                         dimension_numbers=("NCHW", "OIHW", "NCHW"))
        h = mish(h + b[None, :, None, None])
    h = h.reshape(h.shape[0], -1)
    for (w, b) in params["lin"]:
        h = mish(h @ w.T + b)
    logits = h @ params["lin_out"].T
    return jax.nn.log_softmax(logits, axis=-1)


# ---------------------------------------------------------------------------
if __name__ == "__main__":
    IMG_SIZE = 16
    N_DIGITS = 10
    CONV_SIZES = (4, 8)
    LIN_SIZES = (32,)
    BATCH = 2

    key = jax.random.PRNGKey(0)
    k_params, k_x = jax.random.split(key)

    params = init_params(k_params, IMG_SIZE, N_DIGITS, CONV_SIZES, LIN_SIZES)
    prepped = prepare_params(params, IMG_SIZE)          # one-time, hoisted
    x = jax.random.normal(k_x, (BATCH, IMG_SIZE, IMG_SIZE), jnp.float32)

    fwd = jax.jit(multi_conv_lin_forward, static_argnums=(2,))
    log_p = jax.block_until_ready(fwd(prepped, x, N_DIGITS))

    assert log_p.shape == (BATCH, N_DIGITS), log_p.shape
    assert bool(jnp.all(jnp.isfinite(log_p)))
    # log_softmax rows must (approximately) sum to 1 in probability space
    assert jnp.allclose(jnp.sum(jnp.exp(log_p), axis=1), 1.0, atol=1e-4)
    # match the independent f32 pure-JAX reference (bf16 weights/activations -> loose tol)
    ref = _reference_forward(params, x)
    assert jnp.allclose(log_p, ref, atol=5e-2, rtol=5e-2), \
        float(jnp.max(jnp.abs(log_p - ref)))

    print("KERNEL_OK")
</pallas_src>

<mosaic_0001>
module attributes {stable_mosaic.version = 11 : i64} {
  func.func @_fused_forward_kernel(%arg0: i32, %arg1: memref<8x256xbf16, #tpu.memory_space<vmem>>, %arg2: memref<256x256xbf16, #tpu.memory_space<vmem>>, %arg3: memref<256x128xbf16, #tpu.memory_space<vmem>>, %arg4: memref<128x128xbf16, #tpu.memory_space<vmem>>, %arg5: memref<128x128xbf16, #tpu.memory_space<vmem>>, %arg6: memref<3x256xf32, #tpu.memory_space<vmem>>, %arg7: memref<8x128xf32, #tpu.memory_space<vmem>>) attributes {dimension_semantics = [#tpu.dimension_semantics<parallel>], iteration_bounds = array<i64: 1>, scalar_prefetch = 0 : i64, scratch_operands = 0 : i64, tpu.core_type = #tpu.core_type<tc>, window_params = [{transform_indices = @transform_0, window_bounds = array<i64: 8, 256>}, {pipeline_mode = #tpu.pipeline_mode<synchronous>, transform_indices = @transform_1, window_bounds = array<i64: 256, 256>}, {pipeline_mode = #tpu.pipeline_mode<synchronous>, transform_indices = @transform_2, window_bounds = array<i64: 256, 128>}, {pipeline_mode = #tpu.pipeline_mode<synchronous>, transform_indices = @transform_3, window_bounds = array<i64: 128, 128>}, {pipeline_mode = #tpu.pipeline_mode<synchronous>, transform_indices = @transform_4, window_bounds = array<i64: 128, 128>}, {pipeline_mode = #tpu.pipeline_mode<synchronous>, transform_indices = @transform_5, window_bounds = array<i64: 3, 256>}, {transform_indices = @transform_6, window_bounds = array<i64: 8, 128>}]} {
    %c0 = arith.constant 0 : index
    %c0_0 = arith.constant 0 : index
    %0 = vector.load %arg1[%c0, %c0_0] : memref<8x256xbf16, #tpu.memory_space<vmem>>, vector<8x256xbf16>
    %c0_1 = arith.constant 0 : index
    %c0_2 = arith.constant 0 : index
    %1 = vector.load %arg2[%c0_1, %c0_2] : memref<256x256xbf16, #tpu.memory_space<vmem>>, vector<256x256xbf16>
    %cst = arith.constant dense<0.000000e+00> : vector<8x256xf32>
    %2 = tpu.matmul %0, %1, %cst {dimension_numbers = #tpu.dot_dimension_numbers<[1], [0], [0], [1], [0, 0, 1, 1], [], []>} : vector<8x256xbf16>, vector<256x256xbf16>, vector<8x256xf32> -> vector<8x256xf32>
    %c0_3 = arith.constant 0 : index
    %c0_4 = arith.constant 0 : index
    %3 = vector.load %arg6[%c0_3, %c0_4] : memref<3x256xf32, #tpu.memory_space<vmem>>, vector<1x256xf32>
    %4 = vector.broadcast %3 : vector<1x256xf32> to vector<8x256xf32>
    %5 = arith.addf %2, %4 : vector<8x256xf32>
    %cst_5 = arith.constant 2.500000e+01 : f32
    %6 = vector.broadcast %cst_5 : f32 to vector<8x256xf32>
    %7 = arith.minimumf %5, %6 : vector<8x256xf32>
    %8 = math.exp %7 : vector<8x256xf32>
    %cst_6 = arith.constant 1.000000e+00 : f32
    %9 = vector.broadcast %cst_6 : f32 to vector<8x256xf32>
    %10 = arith.addf %8, %9 : vector<8x256xf32>
    %cst_7 = arith.constant 1.000000e+00 : f32
    %11 = vector.broadcast %cst_7 : f32 to vector<8x256xf32>
    %12 = arith.addf %8, %11 : vector<8x256xf32>
    %13 = arith.mulf %10, %12 : vector<8x256xf32>
    %cst_8 = arith.constant 1.000000e+00 : f32
    %14 = vector.broadcast %cst_8 : f32 to vector<8x256xf32>
    %15 = arith.subf %13, %14 : vector<8x256xf32>
    %16 = arith.mulf %5, %15 : vector<8x256xf32>
    %cst_9 = arith.constant 1.000000e+00 : f32
    %17 = vector.broadcast %cst_9 : f32 to vector<8x256xf32>
    %18 = arith.addf %13, %17 : vector<8x256xf32>
    %19 = arith.divf %16, %18 : vector<8x256xf32>
    %20 = arith.truncf %19 : vector<8x256xf32> to vector<8x256xbf16>
    %c0_10 = arith.constant 0 : index
    %c0_11 = arith.constant 0 : index
    %21 = vector.load %arg3[%c0_10, %c0_11] : memref<256x128xbf16, #tpu.memory_space<vmem>>, vector<256x128xbf16>
    %cst_12 = arith.constant dense<0.000000e+00> : vector<8x128xf32>
    %22 = tpu.matmul %20, %21, %cst_12 {dimension_numbers = #tpu.dot_dimension_numbers<[1], [0], [0], [1], [0, 0, 1, 1], [], []>} : vector<8x256xbf16>, vector<256x128xbf16>, vector<8x128xf32> -> vector<8x128xf32>
    %c1 = arith.constant 1 : index
    %c0_13 = arith.constant 0 : index
    %23 = vector.load %arg6[%c1, %c0_13] : memref<3x256xf32, #tpu.memory_space<vmem>>, vector<1x128xf32>
    %24 = vector.broadcast %23 : vector<1x128xf32> to vector<8x128xf32>
    %25 = arith.addf %22, %24 : vector<8x128xf32>
    %cst_14 = arith.constant 2.500000e+01 : f32
    %26 = vector.broadcast %cst_14 : f32 to vector<8x128xf32>
    %27 = arith.minimumf %25, %26 : vector<8x128xf32>
    %28 = math.exp %27 : vector<8x128xf32>
    %cst_15 = arith.constant 1.000000e+00 : f32
    %29 = vector.broadcast %cst_15 : f32 to vector<8x128xf32>
    %30 = arith.addf %28, %29 : vector<8x128xf32>
    %cst_16 = arith.constant 1.000000e+00 : f32
    %31 = vector.broadcast %cst_16 : f32 to vector<8x128xf32>
    %32 = arith.addf %28, %31 : vector<8x128xf32>
    %33 = arith.mulf %30, %32 : vector<8x128xf32>
    %cst_17 = arith.constant 1.000000e+00 : f32
    %34 = vector.broadcast %cst_17 : f32 to vector<8x128xf32>
    %35 = arith.subf %33, %34 : vector<8x128xf32>
    %36 = arith.mulf %25, %35 : vector<8x128xf32>
    %cst_18 = arith.constant 1.000000e+00 : f32
    %37 = vector.broadcast %cst_18 : f32 to vector<8x128xf32>
    %38 = arith.addf %33, %37 : vector<8x128xf32>
    %39 = arith.divf %36, %38 : vector<8x128xf32>
    %40 = arith.truncf %39 : vector<8x128xf32> to vector<8x128xbf16>
    %c0_19 = arith.constant 0 : index
    %c0_20 = arith.constant 0 : index
    %41 = vector.load %arg4[%c0_19, %c0_20] : memref<128x128xbf16, #tpu.memory_space<vmem>>, vector<128x128xbf16>
    %cst_21 = arith.constant dense<0.000000e+00> : vector<8x128xf32>
    %42 = tpu.matmul %40, %41, %cst_21 {dimension_numbers = #tpu.dot_dimension_numbers<[1], [0], [0], [1], [0, 0, 1, 1], [], []>} : vector<8x128xbf16>, vector<128x128xbf16>, vector<8x128xf32> -> vector<8x128xf32>
    %c2 = arith.constant 2 : index
    %c0_22 = arith.constant 0 : index
    %43 = vector.load %arg6[%c2, %c0_22] : memref<3x256xf32, #tpu.memory_space<vmem>>, vector<1x128xf32>
    %44 = vector.broadcast %43 : vector<1x128xf32> to vector<8x128xf32>
    %45 = arith.addf %42, %44 : vector<8x128xf32>
    %cst_23 = arith.constant 2.500000e+01 : f32
    %46 = vector.broadcast %cst_23 : f32 to vector<8x128xf32>
    %47 = arith.minimumf %45, %46 : vector<8x128xf32>
    %48 = math.exp %47 : vector<8x128xf32>
    %cst_24 = arith.constant 1.000000e+00 : f32
    %49 = vector.broadcast %cst_24 : f32 to vector<8x128xf32>
    %50 = arith.addf %48, %49 : vector<8x128xf32>
    %cst_25 = arith.constant 1.000000e+00 : f32
    %51 = vector.broadcast %cst_25 : f32 to vector<8x128xf32>
    %52 = arith.addf %48, %51 : vector<8x128xf32>
    %53 = arith.mulf %50, %52 : vector<8x128xf32>
    %cst_26 = arith.constant 1.000000e+00 : f32
    %54 = vector.broadcast %cst_26 : f32 to vector<8x128xf32>
    %55 = arith.subf %53, %54 : vector<8x128xf32>
    %56 = arith.mulf %45, %55 : vector<8x128xf32>
    %cst_27 = arith.constant 1.000000e+00 : f32
    %57 = vector.broadcast %cst_27 : f32 to vector<8x128xf32>
    %58 = arith.addf %53, %57 : vector<8x128xf32>
    %59 = arith.divf %56, %58 : vector<8x128xf32>
    %60 = arith.truncf %59 : vector<8x128xf32> to vector<8x128xbf16>
    %c0_28 = arith.constant 0 : index
    %c0_29 = arith.constant 0 : index
    %61 = vector.load %arg5[%c0_28, %c0_29] : memref<128x128xbf16, #tpu.memory_space<vmem>>, vector<128x128xbf16>
    %cst_30 = arith.constant dense<0.000000e+00> : vector<8x128xf32>
    %62 = tpu.matmul %60, %61, %cst_30 {dimension_numbers = #tpu.dot_dimension_numbers<[1], [0], [0], [1], [0, 0, 1, 1], [], []>} : vector<8x128xbf16>, vector<128x128xbf16>, vector<8x128xf32> -> vector<8x128xf32>
    %63 = tpu.iota {dimensions = array<i32: 1>} : vector<8x128xi32>
    %c10_i32 = arith.constant 10 : i32
    %64 = vector.broadcast %c10_i32 : i32 to vector<8x128xi32>
    %65 = arith.cmpi slt, %63, %64 : vector<8x128xi32>
    %cst_31 = arith.constant -1.000000e+30 : f32
    %66 = vector.broadcast %cst_31 : f32 to vector<8x128xf32>
    %67 = arith.select %65, %62, %66 : vector<8x128xi1>, vector<8x128xf32>
    %cst_32 = arith.constant dense<0xFF800000> : vector<8xf32>
    %68 = vector.multi_reduction <maximumf>, %67, %cst_32 [1] : vector<8x128xf32> to vector<8xf32>
    %69 = vector.shape_cast %68 : vector<8xf32> to vector<8x1xf32>
    %70 = vector.broadcast %69 : vector<8x1xf32> to vector<8x128xf32>
    %71 = arith.subf %67, %70 : vector<8x128xf32>
    %72 = math.exp %71 : vector<8x128xf32>
    %cst_33 = arith.constant dense<0.000000e+00> : vector<8xf32>
    %73 = vector.multi_reduction <add>, %72, %cst_33 [1] : vector<8x128xf32> to vector<8xf32>
    %74 = vector.shape_cast %73 : vector<8xf32> to vector<8x1xf32>
    %75 = math.log %74 : vector<8x1xf32>
    %76 = vector.broadcast %75 : vector<8x1xf32> to vector<8x128xf32>
    %77 = arith.subf %71, %76 : vector<8x128xf32>
    %cst_34 = arith.constant 0.000000e+00 : f32
    %78 = vector.broadcast %cst_34 : f32 to vector<8x128xf32>
    %79 = arith.select %65, %77, %78 : vector<8x128xi1>, vector<8x128xf32>
    %c0_35 = arith.constant 0 : index
    %c0_36 = arith.constant 0 : index
    %80 = vector.load %arg7[%c0_35, %c0_36] : memref<8x128xf32, #tpu.memory_space<vmem>>, vector<8x128xf32>
    tpu.vector_store %arg7[%c0_35, %c0_36], %79 {strides = array<i32>} : memref<8x128xf32, #tpu.memory_space<vmem>>, vector<8x128xf32>,
    return
  }
  func.func @transform_0(%arg0: i32) -> (i32, i32) {
    %c0_i32 = arith.constant 0 : i32
    %c0_i32_0 = arith.constant 0 : i32
    return %arg0, %c0_i32 : i32, i32
  }
  func.func @transform_1(%arg0: i32) -> (i32, i32) {
    %c0_i32 = arith.constant 0 : i32
    %c0_i32_0 = arith.constant 0 : i32
    %c0_i32_1 = arith.constant 0 : i32
    return %c0_i32, %c0_i32_0 : i32, i32
  }
  func.func @transform_2(%arg0: i32) -> (i32, i32) {
    %c0_i32 = arith.constant 0 : i32
    %c0_i32_0 = arith.constant 0 : i32
    %c0_i32_1 = arith.constant 0 : i32
    return %c0_i32, %c0_i32_0 : i32, i32
  }
  func.func @transform_3(%arg0: i32) -> (i32, i32) {
    %c0_i32 = arith.constant 0 : i32
    %c0_i32_0 = arith.constant 0 : i32
    %c0_i32_1 = arith.constant 0 : i32
    return %c0_i32, %c0_i32_0 : i32, i32
  }
  func.func @transform_4(%arg0: i32) -> (i32, i32) {
    %c0_i32 = arith.constant 0 : i32
    %c0_i32_0 = arith.constant 0 : i32
    %c0_i32_1 = arith.constant 0 : i32
    return %c0_i32, %c0_i32_0 : i32, i32
  }
  func.func @transform_5(%arg0: i32) -> (i32, i32) {
    %c0_i32 = arith.constant 0 : i32
    %c0_i32_0 = arith.constant 0 : i32
    %c0_i32_1 = arith.constant 0 : i32
    return %c0_i32, %c0_i32_0 : i32, i32
  }
  func.func @transform_6(%arg0: i32) -> (i32, i32) {
    %c0_i32 = arith.constant 0 : i32
    %c0_i32_0 = arith.constant 0 : i32
    return %arg0, %c0_i32 : i32, i32
  }
}

</mosaic_0001>

<llo_original>
// kernel: multi_conv_lin_forward.1
$region0: #{multi_conv_lin_forward.1}
  #allocation0 [shape = 'u32[]', space=smem, size = 0x4, offset = 0x4, fixed_abs, tag = 'smem constant byte address 0x4 - core index']
  #allocation1 [shape = 'u32[144,128]{1,0:T(1,128)}', space=vmem, size = 0x12000, scoped, tag = 'internal scratch']
  %s0 = inlined_call_operand.vmem [shape: bf16[8,256], index: 0, kind: input, shape index: {}]
  %s1 = inlined_call_operand.hbm [shape: bf16[256,256], index: 1, kind: input, shape index: {}]
  %s2 = inlined_call_operand.hbm [shape: bf16[256,128], index: 2, kind: input, shape index: {}]
  %s3 = inlined_call_operand.vmem [shape: bf16[128,128], index: 3, kind: input, shape index: {}]
  %s4 = inlined_call_operand.hbm [shape: bf16[128,128], index: 4, kind: input, shape index: {}]
  %s5 = inlined_call_operand.vmem [shape: f32[3,256], index: 5, kind: input, shape index: {}]
  %s6 = inlined_call_operand.vmem [shape: f32[8,128], index: 6, kind: output, shape index: {}]
  %s7 = sld [smem:[#allocation0]]
  $region46: #{multi_conv_lin_forward.1} parent=0
    _
  %s9 = ssub.s32 1, %s7
  %s10 = scalar_select 0, %s9, %s7
  $region1: #{multi_conv_lin_forward.1} parent=0
    #allocation2 [shape = 'u8[131072]{0}', space=vmem, size = 0x20000, scoped, tag = 'input window, operand 1, single buffered']
    #allocation3 [shape = 's32[1]{0}', space=sflag, size = 0x4, scoped, tag = 'scoped memory for multi_conv_lin_forward.1']
    #allocation4 [shape = 'u8[65536]{0}', space=vmem, size = 0x10000, scoped, tag = 'input window, operand 2, single buffered']
    #allocation5 [shape = 's32[1]{0}', space=sflag, size = 0x4, scoped, tag = 'scoped memory for multi_conv_lin_forward.1']
    #allocation6 [shape = 'u8[32768]{0}', space=vmem, size = 0x8000, scoped, tag = 'input window, operand 4, single buffered']
    %11 = vsyncpa [#allocation3], 0
    %12 = vsyncpa [#allocation5], 0
    // Predicated region
    $region2: #{multi_conv_lin_forward.1} parent=1 // pred_check
      _
    $region3: #{multi_conv_lin_forward.1} parent=1 // pred_check_branch
      %14 = sbr.rel (0) target = $region5
    $region4: #{multi_conv_lin_forward.1} parent=1 // pred_region
      _
    $region5: #{multi_conv_lin_forward.1} parent=1 // pred_fallthru
      _
    // Predicated region
    $region6: #{multi_conv_lin_forward.1} parent=1 // pred_check
      _
    $region7: #{multi_conv_lin_forward.1} parent=1 // pred_check_branch
      %16 = sbr.rel (0) target = $region9
    $region8: #{multi_conv_lin_forward.1} parent=1 // pred_region
      %s18 = ssub.s32 4096, 4096
      %19 = vsyncadd [#allocation3], %s18
      %s20 = sshll.u32 [#allocation2], 4
      %s21 = int_to_ptr.vmem [resolvable:$true] %s20
      %26 = dma.hbm_to_vmem [thread:$0]  %s1, 4096, %s21, [#allocation3], 128, 128, 8
    $region9: #{multi_conv_lin_forward.1} parent=1 // pred_fallthru
      _
    // Predicated region
    $region10: #{multi_conv_lin_forward.1} parent=1 // pred_check
      _
    $region11: #{multi_conv_lin_forward.1} parent=1 // pred_check_branch
      %28 = sbr.rel (0) target = $region13
    $region12: #{multi_conv_lin_forward.1} parent=1 // pred_region
      %s30 = ssub.s32 2048, 2048
      %31 = vsyncadd [#allocation5], %s30
      %s32 = sshll.u32 [#allocation4], 4
      %s33 = int_to_ptr.vmem [resolvable:$true] %s32
      %38 = dma.hbm_to_vmem [thread:$0]  %s2, 2048, %s33, [#allocation5], 64, 64, 4
    $region13: #{multi_conv_lin_forward.1} parent=1 // pred_fallthru
      _
    // Predicated region
    $region14: #{multi_conv_lin_forward.1} parent=1 // pred_check
      _
    $region15: #{multi_conv_lin_forward.1} parent=1 // pred_check_branch
      %40 = sbr.rel (0) target = $region17
    $region16: #{multi_conv_lin_forward.1} parent=1 // pred_region
      _
    $region17: #{multi_conv_lin_forward.1} parent=1 // pred_fallthru
      _
    // Predicated region
    $region18: #{multi_conv_lin_forward.1} parent=1 // pred_check
      _
    $region19: #{multi_conv_lin_forward.1} parent=1 // pred_check_branch
      %42 = sbr.rel (0) target = $region21
    $region20: #{multi_conv_lin_forward.1} parent=1 // pred_region
      %s44 = ssub.s32 1024, 1024
      %45 = vsyncadd [#allocation5], %s44
      %s46 = sshll.u32 [#allocation6], 4
      %s47 = int_to_ptr.vmem [resolvable:$true] %s46
      %52 = dma.hbm_to_vmem [thread:$0]  %s4, 1024, %s47, [#allocation5], 64, 64, 4
    $region21: #{multi_conv_lin_forward.1} parent=1 // pred_fallthru
      _
    // Predicated region
    $region22: #{multi_conv_lin_forward.1} parent=1 // pred_check
      _
    $region23: #{multi_conv_lin_forward.1} parent=1 // pred_check_branch
      %54 = sbr.rel (0) target = $region25
    $region24: #{multi_conv_lin_forward.1} parent=1 // pred_region
      _
    $region25: #{multi_conv_lin_forward.1} parent=1 // pred_fallthru
      _
    // Predicated region
    $region26: #{multi_conv_lin_forward.1} parent=1 // pred_check
      _
    $region27: #{multi_conv_lin_forward.1} parent=1 // pred_check_branch
      %56 = sbr.rel (0) target = $region29
    $region28: #{multi_conv_lin_forward.1} parent=1 // pred_region
      %57 = dma.done [#allocation3], 4096
    $region29: #{multi_conv_lin_forward.1} parent=1 // pred_fallthru
      _
    // Predicated region
    $region30: #{multi_conv_lin_forward.1} parent=1 // pred_check
      _
    $region31: #{multi_conv_lin_forward.1} parent=1 // pred_check_branch
      %59 = sbr.rel (0) target = $region33
    $region32: #{multi_conv_lin_forward.1} parent=1 // pred_region
      %60 = dma.done [#allocation5], 2048
    $region33: #{multi_conv_lin_forward.1} parent=1 // pred_fallthru
      _
    // Predicated region
    $region34: #{multi_conv_lin_forward.1} parent=1 // pred_check
      _
    $region35: #{multi_conv_lin_forward.1} parent=1 // pred_check_branch
      %62 = sbr.rel (0) target = $region37
    $region36: #{multi_conv_lin_forward.1} parent=1 // pred_region
      %63 = dma.done [#allocation5], 1024
    $region37: #{multi_conv_lin_forward.1} parent=1 // pred_fallthru
      _
    %v65 = vld [vmem:[%s0] sm:$0xff]
    %v66 = vld [vmem:[#allocation2] sm:$0xff]
    %v67 = vld [vmem:[#allocation2 + $0x8] sm:$0xff]
    %v68 = vld [vmem:[#allocation2 + $0x10] sm:$0xff]
    %v69 = vld [vmem:[#allocation2 + $0x18] sm:$0xff]
    %v70 = vld [vmem:[#allocation2 + $0x20] sm:$0xff]
    %v71 = vld [vmem:[#allocation2 + $0x28] sm:$0xff]
    %v72 = vld [vmem:[#allocation2 + $0x30] sm:$0xff]
    %v73 = vld [vmem:[#allocation2 + $0x38] sm:$0xff]
    %v74 = vld [vmem:[#allocation2 + $0x40] sm:$0xff]
    %v75 = vld [vmem:[#allocation2 + $0x48] sm:$0xff]
    %v76 = vld [vmem:[#allocation2 + $0x50] sm:$0xff]
    %v77 = vld [vmem:[#allocation2 + $0x58] sm:$0xff]
    %v78 = vld [vmem:[#allocation2 + $0x60] sm:$0xff]
    %v79 = vld [vmem:[#allocation2 + $0x68] sm:$0xff]
    %v80 = vld [vmem:[#allocation2 + $0x70] sm:$0xff]
    %v81 = vld [vmem:[#allocation2 + $0x78] sm:$0xff]
    %v82 = vld [vmem:[#allocation2 + $0x80] sm:$0xff]
    %v83 = vld [vmem:[#allocation2 + $0x88] sm:$0xff]
    %v84 = vld [vmem:[#allocation2 + $0x90] sm:$0xff]
    %v85 = vld [vmem:[#allocation2 + $0x98] sm:$0xff]
    %v86 = vld [vmem:[#allocation2 + $0xa0] sm:$0xff]
    %v87 = vld [vmem:[#allocation2 + $0xa8] sm:$0xff]
    %v88 = vld [vmem:[#allocation2 + $0xb0] sm:$0xff]
    %v89 = vld [vmem:[#allocation2 + $0xb8] sm:$0xff]
    %v90 = vld [vmem:[#allocation2 + $0xc0] sm:$0xff]
    %v91 = vld [vmem:[#allocation2 + $0xc8] sm:$0xff]
    %v92 = vld [vmem:[#allocation2 + $0xd0] sm:$0xff]
    %v93 = vld [vmem:[#allocation2 + $0xd8] sm:$0xff]
    %v94 = vld [vmem:[#allocation2 + $0xe0] sm:$0xff]
    %v95 = vld [vmem:[#allocation2 + $0xe8] sm:$0xff]
    %v96 = vld [vmem:[#allocation2 + $0xf0] sm:$0xff]
    %v97 = vld [vmem:[#allocation2 + $0xf8] sm:$0xff]
    %v98 = vld [vmem:[%s5] ss:$4 sm:$0x3]
    %v100 = vlaneseq
    %v101 = vshrl.u32 %v100, 7
    %v102 = vsub.s32 0, %v101
    %v103 = vrot.slane %v98, %v102
    %v104 = vlaneseq
    %v105 = vshrl.u32 %v104, 7
    %v106 = vsub.s32 1, %v105
    %v107 = vrot.slane %v98, %v106
    %v111 = vunpack.c.l.b16 %v65
    %v112 = vunpack.c.h.b16 %v65
    %v113 = vpack.c.b16 %v111, %v111
    %v114 = vpack.c.b16 %v112, %v112
    %v149 = vunpack.c.l.b16 %v66
    %v150 = vunpack.c.h.b16 %v66
    %v151 = vunpack.c.l.b16 %v67
    %v152 = vunpack.c.h.b16 %v67
    %v153 = vunpack.c.l.b16 %v68
    %v154 = vunpack.c.h.b16 %v68
    %v155 = vunpack.c.l.b16 %v69
    %v156 = vunpack.c.h.b16 %v69
    %v157 = vunpack.c.l.b16 %v70
    %v158 = vunpack.c.h.b16 %v70
    %v159 = vunpack.c.l.b16 %v71
    %v160 = vunpack.c.h.b16 %v71
    %v161 = vunpack.c.l.b16 %v72
    %v162 = vunpack.c.h.b16 %v72
    %v163 = vunpack.c.l.b16 %v73
    %v164 = vunpack.c.h.b16 %v73
    %v165 = vunpack.c.l.b16 %v74
    %v166 = vunpack.c.h.b16 %v74
    %v167 = vunpack.c.l.b16 %v75
    %v168 = vunpack.c.h.b16 %v75
    %v169 = vunpack.c.l.b16 %v76
    %v170 = vunpack.c.h.b16 %v76
    %v171 = vunpack.c.l.b16 %v77
    %v172 = vunpack.c.h.b16 %v77
    %v173 = vunpack.c.l.b16 %v78
    %v174 = vunpack.c.h.b16 %v78
    %v175 = vunpack.c.l.b16 %v79
    %v176 = vunpack.c.h.b16 %v79
    %v177 = vunpack.c.l.b16 %v80
    %v178 = vunpack.c.h.b16 %v80
    %v179 = vunpack.c.l.b16 %v81
    %v180 = vunpack.c.h.b16 %v81
    %v181 = vunpack.c.l.b16 %v82
    %v182 = vunpack.c.h.b16 %v82
    %v183 = vunpack.c.l.b16 %v83
    %v184 = vunpack.c.h.b16 %v83
    %v185 = vunpack.c.l.b16 %v84
    %v186 = vunpack.c.h.b16 %v84
    %v187 = vunpack.c.l.b16 %v85
    %v188 = vunpack.c.h.b16 %v85
    %v189 = vunpack.c.l.b16 %v86
    %v190 = vunpack.c.h.b16 %v86
    %v191 = vunpack.c.l.b16 %v87
    %v192 = vunpack.c.h.b16 %v87
    %v193 = vunpack.c.l.b16 %v88
    %v194 = vunpack.c.h.b16 %v88
    %v195 = vunpack.c.l.b16 %v89
    %v196 = vunpack.c.h.b16 %v89
    %v197 = vunpack.c.l.b16 %v90
    %v198 = vunpack.c.h.b16 %v90
    %v199 = vunpack.c.l.b16 %v91
    %v200 = vunpack.c.h.b16 %v91
    %v201 = vunpack.c.l.b16 %v92
    %v202 = vunpack.c.h.b16 %v92
    %v203 = vunpack.c.l.b16 %v93
    %v204 = vunpack.c.h.b16 %v93
    %v205 = vunpack.c.l.b16 %v94
    %v206 = vunpack.c.h.b16 %v94
    %v207 = vunpack.c.l.b16 %v95
    %v208 = vunpack.c.h.b16 %v95
    %v209 = vunpack.c.l.b16 %v96
    %v210 = vunpack.c.h.b16 %v96
    %v211 = vunpack.c.l.b16 %v97
    %v212 = vunpack.c.h.b16 %v97
    %v213 = vpack.c.b16 %v151, %v149
    %v214 = vpack.c.b16 %v152, %v150
    %v215 = vpack.c.b16 %v155, %v153
    %v216 = vpack.c.b16 %v156, %v154
    %v217 = vpack.c.b16 %v159, %v157
    %v218 = vpack.c.b16 %v160, %v158
    %v219 = vpack.c.b16 %v163, %v161
    %v220 = vpack.c.b16 %v164, %v162
    %v221 = vpack.c.b16 %v167, %v165
    %v222 = vpack.c.b16 %v168, %v166
    %v223 = vpack.c.b16 %v171, %v169
    %v224 = vpack.c.b16 %v172, %v170
    %v225 = vpack.c.b16 %v175, %v173
    %v226 = vpack.c.b16 %v176, %v174
    %v227 = vpack.c.b16 %v179, %v177
    %v228 = vpack.c.b16 %v180, %v178
    %v229 = vpack.c.b16 %v183, %v181
    %v230 = vpack.c.b16 %v184, %v182
    %v231 = vpack.c.b16 %v187, %v185
    %v232 = vpack.c.b16 %v188, %v186
    %v233 = vpack.c.b16 %v191, %v189
    %v234 = vpack.c.b16 %v192, %v190
    %v235 = vpack.c.b16 %v195, %v193
    %v236 = vpack.c.b16 %v196, %v194
    %v237 = vpack.c.b16 %v199, %v197
    %v238 = vpack.c.b16 %v200, %v198
    %v239 = vpack.c.b16 %v203, %v201
    %v240 = vpack.c.b16 %v204, %v202
    %v241 = vpack.c.b16 %v207, %v205
    %v242 = vpack.c.b16 %v208, %v206
    %v243 = vpack.c.b16 %v211, %v209
    %v244 = vpack.c.b16 %v212, %v210
    %277 = vmatprep.subr.bf16.mxu0 %v214
    %278 = vmatpush1.bf16.msra.mxu0 %v213
    %279 = vmatprep.subr.bf16.mxu0 %v216
    %280 = vmatpush1.bf16.msra.mxu0 %v215
    %281 = vmatprep.subr.bf16.mxu0 %v218
    %282 = vmatpush1.bf16.msra.mxu0 %v217
    %283 = vmatprep.subr.bf16.mxu0 %v220
    %284 = vmatpush1.bf16.msra.mxu0 %v219
    %285 = vmatprep.subr.bf16.mxu0 %v222
    %286 = vmatpush1.bf16.msra.mxu0 %v221
    %287 = vmatprep.subr.bf16.mxu0 %v224
    %288 = vmatpush1.bf16.msra.mxu0 %v223
    %289 = vmatprep.subr.bf16.mxu0 %v226
    %290 = vmatpush1.bf16.msra.mxu0 %v225
    %291 = vmatprep.subr.bf16.mxu0 %v228
    %292 = vmatpush1.bf16.msra.mxu0 %v227
    %293 = vmatprep.subr.bf16.mxu0 %v230
    %294 = vmatpush1.bf16.msra.mxu0 %v229
    %295 = vmatprep.subr.bf16.mxu0 %v232
    %296 = vmatpush1.bf16.msra.mxu0 %v231
    %297 = vmatprep.subr.bf16.mxu0 %v234
    %298 = vmatpush1.bf16.msra.mxu0 %v233
    %299 = vmatprep.subr.bf16.mxu0 %v236
    %300 = vmatpush1.bf16.msra.mxu0 %v235
    %301 = vmatprep.subr.bf16.mxu0 %v238
    %302 = vmatpush1.bf16.msra.mxu0 %v237
    %303 = vmatprep.subr.bf16.mxu0 %v240
    %304 = vmatpush1.bf16.msra.mxu0 %v239
    %305 = vmatprep.subr.bf16.mxu0 %v242
    %306 = vmatpush1.bf16.msra.mxu0 %v241
    %307 = vmatprep.subr.bf16.mxu0 %v244
    %308 = vmatpush1.bf16.msra.mxu0 %v243
    %309 = vmatprep.mubr.bf16.mxu0 %v114
    %310 = vmatmul.mubr.bf16.gmra.mrb[0].mxu0 %v113
    %v311 = vpop.f32.mrb[0].mxu0
    %v312 = vadd.f32 %v103, %v311
    %v313 = vpop.f32.mrb[0].mxu0
    %v314 = vadd.f32 %v107, %v313
    %v315 = vpop.f32.mrb[0].mxu0
    %v316 = vpop.f32.mrb[0].mxu0
    %317 = vdwg.mxu0
    %v318 = vmin.f32 %v312, 25.0
    %v319 = vmin.f32 %v314, 25.0
    %v320 = vmul.f32 %v318, 1.442695
    %v321 = vpow.pop %v320
    %v322 = vmul.f32 %v319, 1.442695
    %v323 = vpow.pop %v322
    %v324 = vadd.f32 %v321, 1.0
    %v325 = vadd.f32 %v323, 1.0
    %v326 = vmul.f32 %v324, %v324
    %v327 = vmul.f32 %v325, %v325
    %v328 = vsub.f32 %v326, 1.0
    %v329 = vsub.f32 %v327, 1.0
    %v330 = vmul.f32 %v312, %v328
    %v331 = vmul.f32 %v314, %v329
    %v332 = vadd.f32 %v326, 1.0
    %v333 = vadd.f32 %v327, 1.0
    %v334 = vrcp.pop %v332
    %v335 = vmul.f32 %v330, %v334
    %v336 = vrcp.pop %v333
    %v337 = vmul.f32 %v331, %v336
    %v338 = vpack.c.bf16 %v335, %v335
    %v339 = vpack.c.bf16 %v337, %v337
    %v340 = vld [vmem:[#allocation4] sm:$0xf]
    %v341 = vld [vmem:[#allocation4 + $0x4] sm:$0xf]
    %v342 = vld [vmem:[#allocation4 + $0x8] sm:$0xf]
    %v343 = vld [vmem:[#allocation4 + $0xc] sm:$0xf]
    %v344 = vld [vmem:[#allocation4 + $0x10] sm:$0xf]
    %v345 = vld [vmem:[#allocation4 + $0x14] sm:$0xf]
    %v346 = vld [vmem:[#allocation4 + $0x18] sm:$0xf]
    %v347 = vld [vmem:[#allocation4 + $0x1c] sm:$0xf]
    %v348 = vld [vmem:[#allocation4 + $0x20] sm:$0xf]
    %v349 = vld [vmem:[#allocation4 + $0x24] sm:$0xf]
    %v350 = vld [vmem:[#allocation4 + $0x28] sm:$0xf]
    %v351 = vld [vmem:[#allocation4 + $0x2c] sm:$0xf]
    %v352 = vld [vmem:[#allocation4 + $0x30] sm:$0xf]
    %v353 = vld [vmem:[#allocation4 + $0x34] sm:$0xf]
    %v354 = vld [vmem:[#allocation4 + $0x38] sm:$0xf]
    %v355 = vld [vmem:[#allocation4 + $0x3c] sm:$0xf]
    %v356 = vld [vmem:[#allocation4 + $0x40] sm:$0xf]
    %v357 = vld [vmem:[#allocation4 + $0x44] sm:$0xf]
    %v358 = vld [vmem:[#allocation4 + $0x48] sm:$0xf]
    %v359 = vld [vmem:[#allocation4 + $0x4c] sm:$0xf]
    %v360 = vld [vmem:[#allocation4 + $0x50] sm:$0xf]
    %v361 = vld [vmem:[#allocation4 + $0x54] sm:$0xf]
    %v362 = vld [vmem:[#allocation4 + $0x58] sm:$0xf]
    %v363 = vld [vmem:[#allocation4 + $0x5c] sm:$0xf]
    %v364 = vld [vmem:[#allocation4 + $0x60] sm:$0xf]
    %v365 = vld [vmem:[#allocation4 + $0x64] sm:$0xf]
    %v366 = vld [vmem:[#allocation4 + $0x68] sm:$0xf]
    %v367 = vld [vmem:[#allocation4 + $0x6c] sm:$0xf]
    %v368 = vld [vmem:[#allocation4 + $0x70] sm:$0xf]
    %v369 = vld [vmem:[#allocation4 + $0x74] sm:$0xf]
    %v370 = vld [vmem:[#allocation4 + $0x78] sm:$0xf]
    %v371 = vld [vmem:[#allocation4 + $0x7c] sm:$0xf]
    %v372 = vld [vmem:[%s5 + $0x1] sm:$0x1]
    %v373 = vlaneseq
    %v374 = vshrl.u32 %v373, 7
    %v375 = vsub.s32 0, %v374
    %v376 = vrot.slane %v372, %v375
    %v409 = vunpack.c.l.b16 %v340
    %v410 = vunpack.c.l.b16 %v341
    %v411 = vunpack.c.l.b16 %v342
    %v412 = vunpack.c.l.b16 %v343
    %v413 = vunpack.c.l.b16 %v344
    %v414 = vunpack.c.l.b16 %v345
    %v415 = vunpack.c.l.b16 %v346
    %v416 = vunpack.c.l.b16 %v347
    %v417 = vunpack.c.l.b16 %v348
    %v418 = vunpack.c.l.b16 %v349
    %v419 = vunpack.c.l.b16 %v350
    %v420 = vunpack.c.l.b16 %v351
    %v421 = vunpack.c.l.b16 %v352
    %v422 = vunpack.c.l.b16 %v353
    %v423 = vunpack.c.l.b16 %v354
    %v424 = vunpack.c.l.b16 %v355
    %v425 = vunpack.c.l.b16 %v356
    %v426 = vunpack.c.l.b16 %v357
    %v427 = vunpack.c.l.b16 %v358
    %v428 = vunpack.c.l.b16 %v359
    %v429 = vunpack.c.l.b16 %v360
    %v430 = vunpack.c.l.b16 %v361
    %v431 = vunpack.c.l.b16 %v362
    %v432 = vunpack.c.l.b16 %v363
    %v433 = vunpack.c.l.b16 %v364
    %v434 = vunpack.c.l.b16 %v365
    %v435 = vunpack.c.l.b16 %v366
    %v436 = vunpack.c.l.b16 %v367
    %v437 = vunpack.c.l.b16 %v368
    %v438 = vunpack.c.l.b16 %v369
    %v439 = vunpack.c.l.b16 %v370
    %v440 = vunpack.c.l.b16 %v371
    %v441 = vpack.c.b16 %v410, %v409
    %v442 = vpack.c.b16 %v412, %v411
    %v443 = vpack.c.b16 %v414, %v413
    %v444 = vpack.c.b16 %v416, %v415
    %v445 = vpack.c.b16 %v418, %v417
    %v446 = vpack.c.b16 %v420, %v419
    %v447 = vpack.c.b16 %v422, %v421
    %v448 = vpack.c.b16 %v424, %v423
    %v449 = vpack.c.b16 %v426, %v425
    %v450 = vpack.c.b16 %v428, %v427
    %v451 = vpack.c.b16 %v430, %v429
    %v452 = vpack.c.b16 %v432, %v431
    %v453 = vpack.c.b16 %v434, %v433
    %v454 = vpack.c.b16 %v436, %v435
    %v455 = vpack.c.b16 %v438, %v437
    %v456 = vpack.c.b16 %v440, %v439
    %473 = vmatprep.subr.bf16.mxu0 0
    %474 = vmatpush1.bf16.msra.mxu0 %v441
    %475 = vmatprep.subr.bf16.mxu0 0
    %476 = vmatpush1.bf16.msra.mxu0 %v442
    %477 = vmatprep.subr.bf16.mxu0 0
    %478 = vmatpush1.bf16.msra.mxu0 %v443
    %479 = vmatprep.subr.bf16.mxu0 0
    %480 = vmatpush1.bf16.msra.mxu0 %v444
    %481 = vmatprep.subr.bf16.mxu0 0
    %482 = vmatpush1.bf16.msra.mxu0 %v445
    %483 = vmatprep.subr.bf16.mxu0 0
    %484 = vmatpush1.bf16.msra.mxu0 %v446
    %485 = vmatprep.subr.bf16.mxu0 0
    %486 = vmatpush1.bf16.msra.mxu0 %v447
    %487 = vmatprep.subr.bf16.mxu0 0
    %488 = vmatpush1.bf16.msra.mxu0 %v448
    %489 = vmatprep.subr.bf16.mxu0 0
    %490 = vmatpush1.bf16.msra.mxu0 %v449
    %491 = vmatprep.subr.bf16.mxu0 0
    %492 = vmatpush1.bf16.msra.mxu0 %v450
    %493 = vmatprep.subr.bf16.mxu0 0
    %494 = vmatpush1.bf16.msra.mxu0 %v451
    %495 = vmatprep.subr.bf16.mxu0 0
    %496 = vmatpush1.bf16.msra.mxu0 %v452
    %497 = vmatprep.subr.bf16.mxu0 0
    %498 = vmatpush1.bf16.msra.mxu0 %v453
    %499 = vmatprep.subr.bf16.mxu0 0
    %500 = vmatpush1.bf16.msra.mxu0 %v454
    %501 = vmatprep.subr.bf16.mxu0 0
    %502 = vmatpush1.bf16.msra.mxu0 %v455
    %503 = vmatprep.subr.bf16.mxu0 0
    %504 = vmatpush1.bf16.msra.mxu0 %v456
    %505 = vmatprep.mubr.bf16.mxu0 %v339
    %506 = vmatmul.mubr.bf16.gmra.mrb[0].mxu0 %v338
    %v507 = vpop.f32.mrb[0].mxu0
    %v508 = vadd.f32 %v376, %v507
    %v509 = vpop.f32.mrb[0].mxu0
    %v510 = vpop.f32.mrb[0].mxu0
    %v511 = vpop.f32.mrb[0].mxu0
    %512 = vdwg.mxu0
    %v513 = vmin.f32 %v508, 25.0
    %v514 = vmul.f32 %v513, 1.442695
    %v515 = vpow.pop %v514
    %v516 = vadd.f32 %v515, 1.0
    %v517 = vmul.f32 %v516, %v516
    %v518 = vsub.f32 %v517, 1.0
    %v519 = vmul.f32 %v508, %v518
    %v520 = vadd.f32 %v517, 1.0
    %v521 = vrcp.pop %v520
    %v522 = vmul.f32 %v519, %v521
    %v523 = vpack.c.bf16 %v522, %v522
    %v524 = vld [vmem:[%s3] sm:$0xf]
    %v525 = vld [vmem:[%s3 + $0x4] sm:$0xf]
    %v526 = vld [vmem:[%s3 + $0x8] sm:$0xf]
    %v527 = vld [vmem:[%s3 + $0xc] sm:$0xf]
    %v528 = vld [vmem:[%s3 + $0x10] sm:$0xf]
    %v529 = vld [vmem:[%s3 + $0x14] sm:$0xf]
    %v530 = vld [vmem:[%s3 + $0x18] sm:$0xf]
    %v531 = vld [vmem:[%s3 + $0x1c] sm:$0xf]
    %v532 = vld [vmem:[%s3 + $0x20] sm:$0xf]
    %v533 = vld [vmem:[%s3 + $0x24] sm:$0xf]
    %v534 = vld [vmem:[%s3 + $0x28] sm:$0xf]
    %v535 = vld [vmem:[%s3 + $0x2c] sm:$0xf]
    %v536 = vld [vmem:[%s3 + $0x30] sm:$0xf]
    %v537 = vld [vmem:[%s3 + $0x34] sm:$0xf]
    %v538 = vld [vmem:[%s3 + $0x38] sm:$0xf]
    %v539 = vld [vmem:[%s3 + $0x3c] sm:$0xf]
    %v540 = vld [vmem:[%s5 + $0x2] sm:$0x1]
    %v541 = vlaneseq
    %v542 = vshrl.u32 %v541, 7
    %v543 = vsub.s32 0, %v542
    %v544 = vrot.slane %v540, %v543
    %v561 = vunpack.c.l.b16 %v524
    %v562 = vunpack.c.l.b16 %v525
    %v563 = vunpack.c.l.b16 %v526
    %v564 = vunpack.c.l.b16 %v527
    %v565 = vunpack.c.l.b16 %v528
    %v566 = vunpack.c.l.b16 %v529
    %v567 = vunpack.c.l.b16 %v530
    %v568 = vunpack.c.l.b16 %v531
    %v569 = vunpack.c.l.b16 %v532
    %v570 = vunpack.c.l.b16 %v533
    %v571 = vunpack.c.l.b16 %v534
    %v572 = vunpack.c.l.b16 %v535
    %v573 = vunpack.c.l.b16 %v536
    %v574 = vunpack.c.l.b16 %v537
    %v575 = vunpack.c.l.b16 %v538
    %v576 = vunpack.c.l.b16 %v539
    %v577 = vpack.c.b16 %v562, %v561
    %v578 = vpack.c.b16 %v564, %v563
    %v579 = vpack.c.b16 %v566, %v565
    %v580 = vpack.c.b16 %v568, %v567
    %v581 = vpack.c.b16 %v570, %v569
    %v582 = vpack.c.b16 %v572, %v571
    %v583 = vpack.c.b16 %v574, %v573
    %v584 = vpack.c.b16 %v576, %v575
    %593 = vmatprep.subr.bf16.mxu0 0
    %594 = vmatpush1.bf16.msra.mxu0 %v577
    %595 = vmatprep.subr.bf16.mxu0 0
    %596 = vmatpush1.bf16.msra.mxu0 %v578
    %597 = vmatprep.subr.bf16.mxu0 0
    %598 = vmatpush1.bf16.msra.mxu0 %v579
    %599 = vmatprep.subr.bf16.mxu0 0
    %600 = vmatpush1.bf16.msra.mxu0 %v580
    %601 = vmatprep.subr.bf16.mxu0 0
    %602 = vmatpush1.bf16.msra.mxu0 %v581
    %603 = vmatprep.subr.bf16.mxu0 0
    %604 = vmatpush1.bf16.msra.mxu0 %v582
    %605 = vmatprep.subr.bf16.mxu0 0
    %606 = vmatpush1.bf16.msra.mxu0 %v583
    %607 = vmatprep.subr.bf16.mxu0 0
    %608 = vmatpush1.bf16.msra.mxu0 %v584
    %609 = vmatprep.subr.bf16.mxu0 0
    %610 = vmatpush1.bf16.msra.mxu0 0
    %611 = vmatprep.subr.bf16.mxu0 0
    %612 = vmatpush1.bf16.msra.mxu0 0
    %613 = vmatprep.subr.bf16.mxu0 0
    %614 = vmatpush1.bf16.msra.mxu0 0
    %615 = vmatprep.subr.bf16.mxu0 0
    %616 = vmatpush1.bf16.msra.mxu0 0
    %617 = vmatprep.subr.bf16.mxu0 0
    %618 = vmatpush1.bf16.msra.mxu0 0
    %619 = vmatprep.subr.bf16.mxu0 0
    %620 = vmatpush1.bf16.msra.mxu0 0
    %621 = vmatprep.subr.bf16.mxu0 0
    %622 = vmatpush1.bf16.msra.mxu0 0
    %623 = vmatprep.subr.bf16.mxu0 0
    %624 = vmatpush1.bf16.msra.mxu0 0
    %625 = vmatprep.mubr.bf16.mxu0 0
    %626 = vmatmul.mubr.bf16.gmra.mrb[0].mxu0 %v523
    %v627 = vpop.f32.mrb[0].mxu0
    %v628 = vadd.f32 %v544, %v627
    %v629 = vpop.f32.mrb[0].mxu0
    %v630 = vpop.f32.mrb[0].mxu0
    %v631 = vpop.f32.mrb[0].mxu0
    %632 = vdwg.mxu0
    %v633 = vmin.f32 %v628, 25.0
    %v634 = vmul.f32 %v633, 1.442695
    %v635 = vpow.pop %v634
    %v636 = vadd.f32 %v635, 1.0
    %v637 = vmul.f32 %v636, %v636
    %v638 = vsub.f32 %v637, 1.0
    %v639 = vmul.f32 %v628, %v638
    %v640 = vadd.f32 %v637, 1.0
    %v641 = vrcp.pop %v640
    %v642 = vmul.f32 %v639, %v641
    %v643 = vpack.c.bf16 %v642, %v642
    %v644 = vld [vmem:[#allocation6] sm:$0xf]
    %v645 = vld [vmem:[#allocation6 + $0x4] sm:$0xf]
    %v646 = vld [vmem:[#allocation6 + $0x8] sm:$0xf]
    %v647 = vld [vmem:[#allocation6 + $0xc] sm:$0xf]
    %v648 = vld [vmem:[#allocation6 + $0x10] sm:$0xf]
    %v649 = vld [vmem:[#allocation6 + $0x14] sm:$0xf]
    %v650 = vld [vmem:[#allocation6 + $0x18] sm:$0xf]
    %v651 = vld [vmem:[#allocation6 + $0x1c] sm:$0xf]
    %v652 = vld [vmem:[#allocation6 + $0x20] sm:$0xf]
    %v653 = vld [vmem:[#allocation6 + $0x24] sm:$0xf]
    %v654 = vld [vmem:[#allocation6 + $0x28] sm:$0xf]
    %v655 = vld [vmem:[#allocation6 + $0x2c] sm:$0xf]
    %v656 = vld [vmem:[#allocation6 + $0x30] sm:$0xf]
    %v657 = vld [vmem:[#allocation6 + $0x34] sm:$0xf]
    %v658 = vld [vmem:[#allocation6 + $0x38] sm:$0xf]
    %v659 = vld [vmem:[#allocation6 + $0x3c] sm:$0xf]
    %v676 = vunpack.c.l.b16 %v644
    %v677 = vunpack.c.l.b16 %v645
    %v678 = vunpack.c.l.b16 %v646
    %v679 = vunpack.c.l.b16 %v647
    %v680 = vunpack.c.l.b16 %v648
    %v681 = vunpack.c.l.b16 %v649
    %v682 = vunpack.c.l.b16 %v650
    %v683 = vunpack.c.l.b16 %v651
    %v684 = vunpack.c.l.b16 %v652
    %v685 = vunpack.c.l.b16 %v653
    %v686 = vunpack.c.l.b16 %v654
    %v687 = vunpack.c.l.b16 %v655
    %v688 = vunpack.c.l.b16 %v656
    %v689 = vunpack.c.l.b16 %v657
    %v690 = vunpack.c.l.b16 %v658
    %v691 = vunpack.c.l.b16 %v659
    %v692 = vpack.c.b16 %v677, %v676
    %v693 = vpack.c.b16 %v679, %v678
    %v694 = vpack.c.b16 %v681, %v680
    %v695 = vpack.c.b16 %v683, %v682
    %v696 = vpack.c.b16 %v685, %v684
    %v697 = vpack.c.b16 %v687, %v686
    %v698 = vpack.c.b16 %v689, %v688
    %v699 = vpack.c.b16 %v691, %v690
    %708 = vmatprep.subr.bf16.mxu0 0
    %709 = vmatpush1.bf16.msra.mxu0 %v692
    %710 = vmatprep.subr.bf16.mxu0 0
    %711 = vmatpush1.bf16.msra.mxu0 %v693
    %712 = vmatprep.subr.bf16.mxu0 0
    %713 = vmatpush1.bf16.msra.mxu0 %v694
    %714 = vmatprep.subr.bf16.mxu0 0
    %715 = vmatpush1.bf16.msra.mxu0 %v695
    %716 = vmatprep.subr.bf16.mxu0 0
    %717 = vmatpush1.bf16.msra.mxu0 %v696
    %718 = vmatprep.subr.bf16.mxu0 0
    %719 = vmatpush1.bf16.msra.mxu0 %v697
    %720 = vmatprep.subr.bf16.mxu0 0
    %721 = vmatpush1.bf16.msra.mxu0 %v698
    %722 = vmatprep.subr.bf16.mxu0 0
    %723 = vmatpush1.bf16.msra.mxu0 %v699
    %724 = vmatprep.subr.bf16.mxu0 0
    %725 = vmatpush1.bf16.msra.mxu0 0
    %726 = vmatprep.subr.bf16.mxu0 0
    %727 = vmatpush1.bf16.msra.mxu0 0
    %728 = vmatprep.subr.bf16.mxu0 0
    %729 = vmatpush1.bf16.msra.mxu0 0
    %730 = vmatprep.subr.bf16.mxu0 0
    %731 = vmatpush1.bf16.msra.mxu0 0
    %732 = vmatprep.subr.bf16.mxu0 0
    %733 = vmatpush1.bf16.msra.mxu0 0
    %734 = vmatprep.subr.bf16.mxu0 0
    %735 = vmatpush1.bf16.msra.mxu0 0
    %736 = vmatprep.subr.bf16.mxu0 0
    %737 = vmatpush1.bf16.msra.mxu0 0
    %738 = vmatprep.subr.bf16.mxu0 0
    %739 = vmatpush1.bf16.msra.mxu0 0
    %740 = vmatprep.mubr.bf16.mxu0 0
    %741 = vmatmul.mubr.bf16.gmra.mrb[0].mxu0 %v643
    %v742 = vpop.f32.mrb[0].mxu0
    %v743 = vadd.f32 0.0, %v742
    %v744 = vpop.f32.mrb[0].mxu0
    %v745 = vpop.f32.mrb[0].mxu0
    %v746 = vpop.f32.mrb[0].mxu0
    %747 = vdwg.mxu0
    %v748 = vlaneseq
    %v749 = vand.u32 %v748, 127
    %vm750 = vcmp.lt.s32.totalorder %v749, 10
    %v751 = vsel %vm750, %v743, -1e+30
    %752 = vmax.xlane.f32.xlu0 %v751
    %v753 = vpop.xlane.xlu0 %752
    %v754 = vsub.f32 %v751, %v753
    %v755 = vmul.f32 %v754, 1.442695
    %v756 = vpow.pop %v755
    %757 = vadd.xlane.f32.xlu0 %v756
    %v758 = vpop.xlane.xlu0 %757
    %v759 = vlog2.pop %v758
    %v760 = vmul.f32 %v759, 0.6931472
    %v761 = vsub.f32 %v754, %v760
    %v762 = vsel %vm750, %v761, 0.0
    %763 = vst [vmem:[%s6] sm:$0xff] %v762
    // Predicated region
    $region38: #{multi_conv_lin_forward.1} parent=1 // pred_check
      _
    $region39: #{multi_conv_lin_forward.1} parent=1 // pred_check_branch
      %765 = sbr.rel (0) target = $region41
    $region40: #{multi_conv_lin_forward.1} parent=1 // pred_region
      _
    $region41: #{multi_conv_lin_forward.1} parent=1 // pred_fallthru
      _
    // Predicated region
    $region42: #{multi_conv_lin_forward.1} parent=1 // pred_check
      _
    $region43: #{multi_conv_lin_forward.1} parent=1 // pred_check_branch
      %767 = sbr.rel (0) target = $region45
    $region44: #{multi_conv_lin_forward.1} parent=1 // pred_region
      _
    $region45: #{multi_conv_lin_forward.1} parent=1 // pred_fallthru
      _
    %768 = vsyncpa [#allocation3], 1
    %769 = vsyncpa [#allocation5], 1

</llo_original>
